<compile_context>
chip_gen: v7x
topology: tpu7x:2x2x1
jax: 0.10.0
libtpu: 0.0.40
codegen_flags: <defaults>
</compile_context>

<pallas_src>
import math

import jax
import jax.numpy as jnp
from jax.experimental import pallas as pl
from jax.experimental.pallas import tpu as pltpu


# ----------------------------------------------------------------------------
# Forward kernel of the wrapped module: y = x @ W + b   (tiled, f32 accumulator)
# ----------------------------------------------------------------------------
def _linear_kernel(x_ref, w_ref, b_ref, o_ref, acc_ref):
    k = pl.program_id(2)

    @pl.when(k == 0)
    def _():
        acc_ref[...] = jnp.zeros_like(acc_ref)

    acc_ref[...] += jnp.dot(x_ref[...], w_ref[...],
                            preferred_element_type=jnp.float32)

    @pl.when(k == pl.num_programs(2) - 1)
    def _():
        o_ref[...] = (acc_ref[...] + b_ref[...].astype(jnp.float32)).astype(o_ref.dtype)


def _pick_tile(dim, targets):
    """Largest target tile that divides dim; fall back to the full dim (always legal)."""
    for t in targets:
        if dim >= t and dim % t == 0:
            return t
    return dim


def linear_forward(x, w, b):
    """x: [B, D], w: [D, N], b: [N] -> [B, N]."""
    B, D = x.shape
    _, N = w.shape
    # 256-aligned M/N tiles for the 2x256^2 MXU (v6e/v7x); 128 still fine on v5e.
    tm = _pick_tile(B, (256, 128, 64, 32, 16, 8))
    tn = _pick_tile(N, (256, 128))
    tk = _pick_tile(D, (512, 256, 128))
    grid = (B // tm, N // tn, D // tk)

    return pl.pallas_call(
        _linear_kernel,
        out_shape=jax.ShapeDtypeStruct((B, N), x.dtype),
        grid_spec=pltpu.PrefetchScalarGridSpec(
            num_scalar_prefetch=0,
            grid=grid,
            in_specs=[
                pl.BlockSpec((tm, tk), lambda i, j, k: (i, k)),
                pl.BlockSpec((tk, tn), lambda i, j, k: (k, j)),
                pl.BlockSpec((1, tn), lambda i, j, k: (0, j)),
            ],
            out_specs=pl.BlockSpec((tm, tn), lambda i, j, k: (i, j)),
            scratch_shapes=[pltpu.VMEM((tm, tn), jnp.float32)],
        ),
        compiler_params=pltpu.CompilerParams(
            dimension_semantics=("parallel", "parallel", "arbitrary")),
    )(x, w, b.reshape(1, N))


# ----------------------------------------------------------------------------
# Fused SWA parameter-averaging kernel (default avg_fn), n > 0 path only:
#   p_swa <- p_swa + (p_model - p_swa) / (n + 1)
# The n == 0 straight-copy path is resolved on the host and never launches.
# ----------------------------------------------------------------------------
def _swa_update_kernel(n_ref, p_swa_ref, p_model_ref, out_ref):
    denom = (n_ref[0] + 1).astype(jnp.float32)
    p_swa = p_swa_ref[...].astype(jnp.float32)     # accumulate in f32 even for bf16 params
    p_model = p_model_ref[...].astype(jnp.float32)
    # Per-element divide is fully hidden under HBM traffic (mem-bound kernel).
    out_ref[...] = (p_swa + (p_model - p_swa) / denom).astype(out_ref.dtype)


def swa_update_flat(flat_swa, flat_model, n_averaged, tile_rows):
    """One lane-dense, tiled, in-place streaming pass over ALL parameters."""
    R, C = flat_swa.shape
    n_arr = jnp.asarray(n_averaged, jnp.int32).reshape(1)
    grid = (R // tile_rows,)

    return pl.pallas_call(
        _swa_update_kernel,
        out_shape=jax.ShapeDtypeStruct((R, C), flat_swa.dtype),
        grid_spec=pltpu.PrefetchScalarGridSpec(
            num_scalar_prefetch=1,
            grid=grid,
            in_specs=[
                pl.BlockSpec((tile_rows, C), lambda i, n_ref: (i, 0)),
                pl.BlockSpec((tile_rows, C), lambda i, n_ref: (i, 0)),
            ],
            out_specs=pl.BlockSpec((tile_rows, C), lambda i, n_ref: (i, 0)),
        ),
        compiler_params=pltpu.CompilerParams(dimension_semantics=("parallel",)),
        # p_swa slab (call arg 1; scalar-prefetch n sits at index 0) aliases output 0.
        input_output_aliases={1: 0},
    )(n_arr, flat_swa, flat_model)


# ----------------------------------------------------------------------------
# AveragedModel: JAX/Pallas analogue of the PyTorch class
# ----------------------------------------------------------------------------
_LANES = 512                 # flattened-parameter slab width (lane-dense, multiple of 128)
_MAX_TILE_BYTES = 2 << 20    # per-buffer tile budget -> ~12 MiB total with double-buffering,
                             # within v7x's 32 MiB scoped VMEM (64 MiB physical)


def _round_up(a, b):
    return (a + b - 1) // b * b


class AveragedModel:
    def __init__(self, params):
        # deepcopy of the wrapped model's parameters, stored as one flattened
        # lane-dense (R, C) slab so update_parameters is a single kernel launch.
        self._names = list(params.keys())
        self._dtype = jnp.asarray(params[self._names[0]]).dtype
        self._layout = {}
        off = 0
        for name in self._names:
            shape = tuple(jnp.asarray(params[name]).shape)
            size = int(math.prod(shape)) if shape else 1
            self._layout[name] = (off, size, shape)
            off += size
        self._total = off

        C = _LANES
        itemsize = jnp.dtype(self._dtype).itemsize
        rows_needed = max(pl.cdiv(self._total, C), 1)
        tr = 8
        while (tr * 2 * C * itemsize <= _MAX_TILE_BYTES
               and tr * 2 <= max(rows_needed, 8)):
            tr *= 2
        self._C = C
        self._tile_rows = tr
        self._R = _round_up(rows_needed, tr)

        self._flat = self._flatten(params)
        # register_buffer('n_averaged', tensor(0, dtype=long))
        self.n_averaged = jnp.array(0, dtype=jnp.int32)
        # TODO(synk): use_buffers / custom avg_fn hooks not mirrored; default avg_fn only.

    def _flatten(self, params):
        parts = [jnp.ravel(jnp.asarray(params[name])).astype(self._dtype)
                 for name in self._names]
        flat = jnp.concatenate(parts)
        pad = self._R * self._C - self._total
        if pad:
            flat = jnp.concatenate([flat, jnp.zeros((pad,), self._dtype)])
        return flat.reshape(self._R, self._C)

    @property
    def params(self):
        flat = self._flat.reshape(-1)
        return {name: flat[off:off + size].reshape(shape)
                for name, (off, size, shape) in self._layout.items()}

    def forward(self, x):
        # self.module(*args): inner model is a Linear layer
        p = self.params
        return linear_forward(x, p["w"], p["b"])

    def update_parameters(self, model_params):
        flat_model = self._flatten(model_params)
        n = int(self.n_averaged)           # host-side branch, same as the torch `if`
        if n == 0:
            # p_swa.detach().copy_(p_model): straight copy; no kernel, no wasted p_swa read
            self._flat = flat_model
        else:
            self._flat = swa_update_flat(self._flat, flat_model, n, self._tile_rows)
        self.n_averaged = self.n_averaged + 1


if __name__ == "__main__":
    key = jax.random.PRNGKey(0)
    k0, k1, k2, k3, k4, kx = jax.random.split(key, 6)

    B, D, N = 8, 32, 32  # small shapes; batch=8, hidden=32

    # Deterministic "checkpoints" of the wrapped Linear model at different SGD steps.
    init_params = {
        "w": jax.random.normal(k0, (D, N), jnp.float32) * 0.1,
        "b": jax.random.normal(k1, (N,), jnp.float32) * 0.1,
    }
    step1_params = {
        "w": jax.random.normal(k2, (D, N), jnp.float32) * 0.1,
        "b": jax.random.normal(k3, (N,), jnp.float32) * 0.1,
    }
    step2_params = {
        "w": jax.random.normal(k4, (D, N), jnp.float32) * 0.1,
        "b": jnp.zeros((N,), jnp.float32),
    }

    x = jax.random.normal(kx, (B, D), jnp.float32)

    swa_model = AveragedModel(init_params)

    # update 1: n_averaged == 0  -> straight copy
    swa_model.update_parameters(step1_params)
    # update 2: n_averaged == 1  -> p + (m - p) / 2
    swa_model.update_parameters(step2_params)

    # forward pass of the averaged module
    y = swa_model.forward(x)
    y = jax.block_until_ready(y)

    # pure-JAX reference for correctness
    ref_w = step1_params["w"] + (step2_params["w"] - step1_params["w"]) / 2.0
    ref_b = step1_params["b"] + (step2_params["b"] - step1_params["b"]) / 2.0
    ref_y = x @ ref_w + ref_b

    assert int(swa_model.n_averaged) == 2
    assert jnp.allclose(swa_model.params["w"], ref_w, atol=1e-6)
    assert jnp.allclose(swa_model.params["b"], ref_b, atol=1e-6)
    assert jnp.allclose(y, ref_y, atol=1e-4, rtol=1e-4)

    print("KERNEL_OK")
</pallas_src>

<mosaic_0001>
module attributes {stable_mosaic.version = 11 : i64} {
  func.func @_swa_update_kernel(%arg0: i32, %arg1: memref<1xi32, #tpu.memory_space<smem>>, %arg2: memref<8x512xf32, #tpu.memory_space<vmem>>, %arg3: memref<8x512xf32, #tpu.memory_space<vmem>>, %arg4: memref<8x512xf32, #tpu.memory_space<vmem>>) attributes {dimension_semantics = [#tpu.dimension_semantics<parallel>], iteration_bounds = array<i64: 1>, scalar_prefetch = 1 : i64, scratch_operands = 0 : i64, tpu.core_type = #tpu.core_type<tc>, window_params = [{transform_indices = @transform_0, window_bounds = array<i64: 8, 512>}, {transform_indices = @transform_1, window_bounds = array<i64: 8, 512>}, {transform_indices = @transform_2, window_bounds = array<i64: 8, 512>}]} {
    %c0 = arith.constant 0 : index
    %0 = memref.load %arg1[%c0] : memref<1xi32, #tpu.memory_space<smem>>
    %c1_i32 = arith.constant 1 : i32
    %1 = arith.addi %0, %c1_i32 : i32
    %2 = arith.sitofp %1 : i32 to f32
    %c0_0 = arith.constant 0 : index
    %c0_1 = arith.constant 0 : index
    %3 = vector.load %arg2[%c0_0, %c0_1] : memref<8x512xf32, #tpu.memory_space<vmem>>, vector<8x512xf32>
    %c0_2 = arith.constant 0 : index
    %c0_3 = arith.constant 0 : index
    %4 = vector.load %arg3[%c0_2, %c0_3] : memref<8x512xf32, #tpu.memory_space<vmem>>, vector<8x512xf32>
    %5 = arith.subf %4, %3 : vector<8x512xf32>
    %6 = vector.broadcast %2 : f32 to vector<8x512xf32>
    %7 = arith.divf %5, %6 : vector<8x512xf32>
    %8 = arith.addf %3, %7 : vector<8x512xf32>
    %c0_4 = arith.constant 0 : index
    %c0_5 = arith.constant 0 : index
    %9 = vector.load %arg4[%c0_4, %c0_5] : memref<8x512xf32, #tpu.memory_space<vmem>>, vector<8x512xf32>
    tpu.vector_store %arg4[%c0_4, %c0_5], %8 {strides = array<i32>} : memref<8x512xf32, #tpu.memory_space<vmem>>, vector<8x512xf32>,
    return
  }
  func.func @transform_0(%arg0: i32, %arg1: memref<1xi32, #tpu.memory_space<smem>>) -> (i32, i32) {
    %c0_i32 = arith.constant 0 : i32
    %c0_i32_0 = arith.constant 0 : i32
    return %arg0, %c0_i32 : i32, i32
  }
  func.func @transform_1(%arg0: i32, %arg1: memref<1xi32, #tpu.memory_space<smem>>) -> (i32, i32) {
    %c0_i32 = arith.constant 0 : i32
    %c0_i32_0 = arith.constant 0 : i32
    return %arg0, %c0_i32 : i32, i32
  }
  func.func @transform_2(%arg0: i32, %arg1: memref<1xi32, #tpu.memory_space<smem>>) -> (i32, i32) {
    %c0_i32 = arith.constant 0 : i32
    %c0_i32_0 = arith.constant 0 : i32
    return %arg0, %c0_i32 : i32, i32
  }
}

</mosaic_0001>

<llo_original>
// kernel: tpu_custom_call.1
$region0: #{tpu_custom_call.1}
  #allocation0 [shape = 'u32[]', space=smem, size = 0x4, offset = 0x4, fixed_abs, tag = 'smem constant byte address 0x4 - core index']
  #allocation1 [shape = 'u32[144,128]{1,0:T(1,128)}', space=vmem, size = 0x12000, scoped, tag = 'internal scratch']
  #allocation2 [shape = 's32[1]{0}', space=sflag, size = 0x4, scoped, tag = 'scoped memory for tpu_custom_call.1']
  #allocation3 [shape = 's32[1]{0:T(128)S(6)}', space=smem, size = 0x200, scoped, tag = 'prefetched SMEM operand 0']
  %s0 = inlined_call_operand.<no memory space> [shape: s32[1], index: 0, kind: input, shape index: {}]
  %s1 = inlined_call_operand.hbm [shape: f32[8,512], index: 1, kind: input, shape index: {}, may-alias: {1,3}]
  %s2 = inlined_call_operand.vmem [shape: f32[8,512], index: 2, kind: input, shape index: {}]
  %s3 = inlined_call_operand.hbm [shape: f32[8,512], index: 3, kind: output, shape index: {}, may-alias: {1,3}]
  %s4 = sld [smem:[#allocation0]]
  $region22: #{tpu_custom_call.1} parent=0
    _
  %s6 = ssub.s32 1, %s4
  %s7 = scalar_select 0, %s6, %s4
  %8 = sst [smem:[#allocation3]] %s0
  $region1: #{tpu_custom_call.1} parent=0
    #allocation4 [shape = 'u8[16384]{0}', space=vmem, size = 0x4000, scoped, tag = 'input window, operand 1, single buffered']
    #allocation5 [shape = 's32[1]{0}', space=sflag, size = 0x4, scoped, tag = 'scoped memory for tpu_custom_call.1']
    #allocation6 [shape = 's32[1]{0}', space=sflag, size = 0x4, scoped, tag = 'scoped memory for tpu_custom_call.1']
    #allocation7 [shape = 'u8[16384]{0}', space=vmem, size = 0x4000, scoped, tag = 'output window, operand 0, single buffered']
    %9 = vsyncpa [#allocation5], 0
    %10 = vsyncpa [#allocation6], 0
    // Predicated region
    $region2: #{tpu_custom_call.1} parent=1 // pred_check
      _
    $region3: #{tpu_custom_call.1} parent=1 // pred_check_branch
      %12 = sbr.rel (0) target = $region5
    $region4: #{tpu_custom_call.1} parent=1 // pred_region
      %s14 = ssub.s32 512, 512
      %15 = vsyncadd [#allocation5], %s14
      %s17 = sshll.u32 [#allocation4], 4
      %s18 = int_to_ptr.vmem [resolvable:$true] %s17
      %20 = dma.hbm_to_vmem [thread:$0]  %s1, 512, %s18, [#allocation5]
    $region5: #{tpu_custom_call.1} parent=1 // pred_fallthru
      _
    // Predicated region
    $region6: #{tpu_custom_call.1} parent=1 // pred_check
      _
    $region7: #{tpu_custom_call.1} parent=1 // pred_check_branch
      %22 = sbr.rel (0) target = $region9
    $region8: #{tpu_custom_call.1} parent=1 // pred_region
      _
    $region9: #{tpu_custom_call.1} parent=1 // pred_fallthru
      _
    // Predicated region
    $region10: #{tpu_custom_call.1} parent=1 // pred_check
      _
    $region11: #{tpu_custom_call.1} parent=1 // pred_check_branch
      %24 = sbr.rel (0) target = $region13
    $region12: #{tpu_custom_call.1} parent=1 // pred_region
      %25 = dma.done [#allocation5], 512
    $region13: #{tpu_custom_call.1} parent=1 // pred_fallthru
      _
    %s26 = sld [smem:[#allocation3]]
    %s27 = sadd.s32 %s26, 1
    %s28 = scvt.s32.f32 %s27
    %v29 = vld [vmem:[#allocation4] sm:$0xff]
    %v30 = vld [vmem:[#allocation4 + $0x8] sm:$0xff]
    %v31 = vld [vmem:[#allocation4 + $0x10] sm:$0xff]
    %v32 = vld [vmem:[#allocation4 + $0x18] sm:$0xff]
    %v33 = vld [vmem:[%s2] sm:$0xff]
    %v34 = vld [vmem:[%s2 + $0x8] sm:$0xff]
    %v35 = vld [vmem:[%s2 + $0x10] sm:$0xff]
    %v36 = vld [vmem:[%s2 + $0x18] sm:$0xff]
    %v37 = vsub.f32 %v33, %v29
    %v38 = vsub.f32 %v34, %v30
    %v39 = vsub.f32 %v35, %v31
    %v40 = vsub.f32 %v36, %v32
    %v41 = vstv %s28
    %v42 = vrcp.pop %v41
    %v43 = vmul.f32 %v37, %v42
    %v44 = vmul.f32 %v38, %v42
    %v45 = vmul.f32 %v39, %v42
    %v46 = vmul.f32 %v40, %v42
    %v47 = vadd.f32 %v29, %v43
    %v48 = vadd.f32 %v30, %v44
    %v49 = vadd.f32 %v31, %v45
    %v50 = vadd.f32 %v32, %v46
    %51 = vst [vmem:[#allocation7] sm:$0xff] %v47
    %52 = vst [vmem:[#allocation7 + $0x8] sm:$0xff] %v48
    %53 = vst [vmem:[#allocation7 + $0x10] sm:$0xff] %v49
    %54 = vst [vmem:[#allocation7 + $0x18] sm:$0xff] %v50
    // Predicated region
    $region14: #{tpu_custom_call.1} parent=1 // pred_check
      _
    $region15: #{tpu_custom_call.1} parent=1 // pred_check_branch
      %56 = sbr.rel (0) target = $region17
    $region16: #{tpu_custom_call.1} parent=1 // pred_region
      %s58 = ssub.s32 512, 512
      %59 = vsyncadd [#allocation6], %s58
      %s61 = sshll.u32 [#allocation7], 4
      %s62 = int_to_ptr.vmem [resolvable:$true] %s61
      %64 = dma.vmem_to_hbm [thread:$0]  %s62, 512, %s3, [#allocation6]
    $region17: #{tpu_custom_call.1} parent=1 // pred_fallthru
      _
    // Predicated region
    $region18: #{tpu_custom_call.1} parent=1 // pred_check
      _
    $region19: #{tpu_custom_call.1} parent=1 // pred_check_branch
      %66 = sbr.rel (0) target = $region21
    $region20: #{tpu_custom_call.1} parent=1 // pred_region
      %67 = dma.done [#allocation6], 512
    $region21: #{tpu_custom_call.1} parent=1 // pred_fallthru
      _
    %68 = vsyncpa [#allocation5], 1
    %69 = vsyncpa [#allocation6], 1

</llo_original>
